<compile_context>
chip_gen: v7x
topology: tpu7x:2x2x1
jax: 0.10.0
libtpu: 0.0.40
codegen_flags: <defaults>
</compile_context>

<pallas_src>
import functools

import jax
import jax.numpy as jnp
from jax import lax
from jax.experimental import pallas as pl
from jax.experimental.pallas import tpu as pltpu

LANES = 128     # lane width: action dim is padded up to a multiple of this
MAX_TILE_B = 8  # sublane tile: up to 8 observations per grid step


def _policy_softmax_kernel(obs_ref, w1_ref, b1_ref, w2_ref, b2_ref, out_ref,
                           *, n_actions):
    """Fused Linear -> ReLU -> Linear -> masked softmax for one tile of observations."""
    tb, a_pad = out_ref.shape
    lane = lax.broadcasted_iota(jnp.int32, (tb, a_pad), 1)
    valid = lane < n_actions

    x = obs_ref[...]                                              # [tb, d_in] f32
    # MXU matmuls: bf16 operands, f32 accumulation. Everything else stays f32 (v5e-safe).
    h = jnp.dot(x.astype(jnp.bfloat16), w1_ref[...],
                preferred_element_type=jnp.float32)               # [tb, hidden]
    h = jnp.maximum(h + b1_ref[...], 0.0)                         # bias + ReLU (f32)
    q = jnp.dot(h.astype(jnp.bfloat16), w2_ref[...],
                preferred_element_type=jnp.float32)               # [tb, a_pad]
    q = q + b2_ref[...]

    q = jnp.where(valid, q, -1e30)                                # mask padded lanes
    m = jnp.max(q, axis=-1, keepdims=True)
    e = jnp.where(valid, jnp.exp(q - m), 0.0)
    denom = jnp.sum(e, axis=-1, keepdims=True)
    out_ref[...] = e / denom                                      # exact divide: rows sum to 1


def prepare_policy_params(w1, b1, w2, b2):
    """One-time (agent-init) weight prep: bf16 cast + lane padding of the action dim.

    Hoisted out of the per-call act() path so every act() reads the weights exactly once.
    """
    d_in, hidden = w1.shape
    a = w2.shape[-1]
    a_pad = pl.cdiv(a, LANES) * LANES
    w1_bf = w1.astype(jnp.bfloat16)                                       # [d_in, hidden]
    b1_2d = b1.reshape(1, hidden).astype(jnp.float32)                     # [1, hidden]
    w2_pad = jnp.zeros((hidden, a_pad), jnp.bfloat16).at[:, :a].set(
        w2.astype(jnp.bfloat16))                                          # [hidden, a_pad]
    b2_pad = jnp.zeros((1, a_pad), jnp.float32).at[:, :a].set(
        b2.reshape(1, a).astype(jnp.float32))                             # [1, a_pad]
    return w1_bf, b1_2d, w2_pad, b2_pad


def policy_softmax(obs, w1_bf, b1_2d, w2_pad, b2_pad, *, n_actions):
    """Batched greedy branch of Agent.act: softmax(policy(obs), -1) per observation row."""
    b, d_in = obs.shape
    hidden = w1_bf.shape[-1]
    a_pad = w2_pad.shape[-1]
    obs = obs.astype(jnp.float32)

    if b <= MAX_TILE_B:
        # Full-array blocks bypass the (8,128) divisibility rule: no obs padding needed.
        tb, b_pad = b, b
    else:
        tb = MAX_TILE_B
        b_pad = pl.cdiv(b, tb) * tb
        if b_pad != b:
            obs = jnp.pad(obs, ((0, b_pad - b), (0, 0)))

    kernel = functools.partial(_policy_softmax_kernel, n_actions=n_actions)
    out = pl.pallas_call(
        kernel,
        out_shape=jax.ShapeDtypeStruct((b_pad, a_pad), jnp.float32),
        grid=(b_pad // tb,),
        in_specs=[
            pl.BlockSpec((tb, d_in), lambda i: (i, 0)),        # obs tile per grid step
            pl.BlockSpec((d_in, hidden), lambda i: (0, 0)),    # weights: resident
            pl.BlockSpec((1, hidden), lambda i: (0, 0)),
            pl.BlockSpec((hidden, a_pad), lambda i: (0, 0)),
            pl.BlockSpec((1, a_pad), lambda i: (0, 0)),
        ],
        out_specs=pl.BlockSpec((tb, a_pad), lambda i: (i, 0)),
        compiler_params=pltpu.CompilerParams(
            # Batch axis is independent -> shards across the two v7x TensorCores.
            dimension_semantics=("parallel",),
        ),
    )(obs, w1_bf, b1_2d, w2_pad, b2_pad)
    return out[:b, :n_actions]


def explore_action(key, n_actions):
    """Exploration branch of Agent.act: min-max normalized uniform noise.

    Plain JAX on purpose: no policy-weight DMA, no kernel launch for explore calls.
    """
    t = jax.random.uniform(key, (n_actions,), jnp.float32)
    return (t - jnp.min(t)) / (jnp.max(t) - jnp.min(t) + 1e-6)


def agent_act(obs, params, epsilon, key, *, n_actions):
    """Agent.act for a single observation: epsilon-greedy dispatch between the
    Pallas policy kernel (greedy) and the weights-free exploration branch."""
    k_eps, k_noise = jax.random.split(key)
    explore = jnp.logical_and(epsilon > 0.0, jax.random.uniform(k_eps) < epsilon)

    def _explore(_):
        return explore_action(k_noise, n_actions)

    def _greedy(_):
        # obs.unsqueeze(0) -> policy -> process_act (squeeze(0) + softmax)
        return policy_softmax(obs[None, :], *params, n_actions=n_actions)[0]

    return lax.cond(explore, _explore, _greedy, operand=None)


if __name__ == "__main__":
    D_IN, HIDDEN, A, BATCH = 32, 128, 6, 8

    key = jax.random.PRNGKey(0)
    k1, k2, k3, k4, k5, k6 = jax.random.split(key, 6)
    obs_batch = jax.random.normal(k1, (BATCH, D_IN), jnp.float32)
    w1 = jax.random.normal(k2, (D_IN, HIDDEN), jnp.float32) * 0.1
    b1 = jax.random.normal(k3, (HIDDEN,), jnp.float32) * 0.1
    w2 = jax.random.normal(k4, (HIDDEN, A), jnp.float32) * 0.1
    b2 = jax.random.normal(k5, (A,), jnp.float32) * 0.1

    # One-time weight preparation (agent init), NOT repeated per act() call.
    params = jax.block_until_ready(prepare_policy_params(w1, b1, w2, b2))

    # --- greedy branch, batched: 8 observations share the one 8-sublane tile -------
    greedy_fn = jax.jit(policy_softmax, static_argnames="n_actions")
    acts = jax.block_until_ready(greedy_fn(obs_batch, *params, n_actions=A))
    assert acts.shape == (BATCH, A), acts.shape

    # pure-JAX reference with the same bf16 operands / f32 accumulation
    h_ref = jnp.maximum(
        jnp.dot(obs_batch.astype(jnp.bfloat16), w1.astype(jnp.bfloat16),
                preferred_element_type=jnp.float32) + b1, 0.0)
    q_ref = jnp.dot(h_ref.astype(jnp.bfloat16), w2.astype(jnp.bfloat16),
                    preferred_element_type=jnp.float32) + b2
    ref = jax.nn.softmax(q_ref, axis=-1)
    err = float(jnp.max(jnp.abs(acts - ref)))
    assert err < 2e-3, f"greedy softmax mismatch: max abs err {err}"
    row_sums = jnp.sum(acts, axis=-1)
    assert float(jnp.max(jnp.abs(row_sums - 1.0))) < 1e-5, "softmax rows must sum to 1"

    # --- full epsilon-greedy act() dispatch for a single observation ---------------
    act_fn = jax.jit(agent_act, static_argnames="n_actions")
    a_greedy = jax.block_until_ready(act_fn(obs_batch[0], params, 0.0, k6, n_actions=A))
    assert a_greedy.shape == (A,), a_greedy.shape
    assert float(jnp.max(jnp.abs(a_greedy - acts[0]))) < 1e-5

    a_explore = jax.block_until_ready(act_fn(obs_batch[0], params, 1.0, k6, n_actions=A))
    assert a_explore.shape == (A,), a_explore.shape
    assert bool(jnp.all(jnp.isfinite(a_explore)))
    assert float(jnp.min(a_explore)) >= 0.0
    assert float(jnp.max(a_explore)) <= 1.0 + 1e-5

    print("KERNEL_OK")
</pallas_src>

<mosaic_0001>
module attributes {stable_mosaic.version = 11 : i64} {
  func.func @_policy_softmax_kernel(%arg0: i32, %arg1: memref<8x32xf32, #tpu.memory_space<vmem>>, %arg2: memref<32x128xbf16, #tpu.memory_space<vmem>>, %arg3: memref<1x128xf32, #tpu.memory_space<vmem>>, %arg4: memref<128x128xbf16, #tpu.memory_space<vmem>>, %arg5: memref<1x128xf32, #tpu.memory_space<vmem>>, %arg6: memref<8x128xf32, #tpu.memory_space<vmem>>) attributes {dimension_semantics = [#tpu.dimension_semantics<parallel>], iteration_bounds = array<i64: 1>, scalar_prefetch = 0 : i64, scratch_operands = 0 : i64, tpu.core_type = #tpu.core_type<tc>, window_params = [{transform_indices = @transform_0, window_bounds = array<i64: 8, 32>}, {pipeline_mode = #tpu.pipeline_mode<synchronous>, transform_indices = @transform_1, window_bounds = array<i64: 32, 128>}, {pipeline_mode = #tpu.pipeline_mode<synchronous>, transform_indices = @transform_2, window_bounds = array<i64: 1, 128>}, {pipeline_mode = #tpu.pipeline_mode<synchronous>, transform_indices = @transform_3, window_bounds = array<i64: 128, 128>}, {pipeline_mode = #tpu.pipeline_mode<synchronous>, transform_indices = @transform_4, window_bounds = array<i64: 1, 128>}, {transform_indices = @transform_5, window_bounds = array<i64: 8, 128>}]} {
    %0 = tpu.iota {dimensions = array<i32: 1>} : vector<8x128xi32>
    %c6_i32 = arith.constant 6 : i32
    %1 = vector.broadcast %c6_i32 : i32 to vector<8x128xi32>
    %2 = arith.cmpi slt, %0, %1 : vector<8x128xi32>
    %c0 = arith.constant 0 : index
    %c0_0 = arith.constant 0 : index
    %3 = vector.load %arg1[%c0, %c0_0] : memref<8x32xf32, #tpu.memory_space<vmem>>, vector<8x32xf32>
    %4 = arith.truncf %3 : vector<8x32xf32> to vector<8x32xbf16>
    %c0_1 = arith.constant 0 : index
    %c0_2 = arith.constant 0 : index
    %5 = vector.load %arg2[%c0_1, %c0_2] : memref<32x128xbf16, #tpu.memory_space<vmem>>, vector<32x128xbf16>
    %cst = arith.constant dense<0.000000e+00> : vector<8x128xf32>
    %6 = tpu.matmul %4, %5, %cst {dimension_numbers = #tpu.dot_dimension_numbers<[1], [0], [0], [1], [0, 0, 1, 1], [], []>} : vector<8x32xbf16>, vector<32x128xbf16>, vector<8x128xf32> -> vector<8x128xf32>
    %c0_3 = arith.constant 0 : index
    %c0_4 = arith.constant 0 : index
    %7 = vector.load %arg3[%c0_3, %c0_4] : memref<1x128xf32, #tpu.memory_space<vmem>>, vector<1x128xf32>
    %8 = vector.broadcast %7 : vector<1x128xf32> to vector<8x128xf32>
    %9 = arith.addf %6, %8 : vector<8x128xf32>
    %cst_5 = arith.constant 0.000000e+00 : f32
    %10 = vector.broadcast %cst_5 : f32 to vector<8x128xf32>
    %11 = arith.maximumf %9, %10 : vector<8x128xf32>
    %12 = arith.truncf %11 : vector<8x128xf32> to vector<8x128xbf16>
    %c0_6 = arith.constant 0 : index
    %c0_7 = arith.constant 0 : index
    %13 = vector.load %arg4[%c0_6, %c0_7] : memref<128x128xbf16, #tpu.memory_space<vmem>>, vector<128x128xbf16>
    %cst_8 = arith.constant dense<0.000000e+00> : vector<8x128xf32>
    %14 = tpu.matmul %12, %13, %cst_8 {dimension_numbers = #tpu.dot_dimension_numbers<[1], [0], [0], [1], [0, 0, 1, 1], [], []>} : vector<8x128xbf16>, vector<128x128xbf16>, vector<8x128xf32> -> vector<8x128xf32>
    %c0_9 = arith.constant 0 : index
    %c0_10 = arith.constant 0 : index
    %15 = vector.load %arg5[%c0_9, %c0_10] : memref<1x128xf32, #tpu.memory_space<vmem>>, vector<1x128xf32>
    %16 = vector.broadcast %15 : vector<1x128xf32> to vector<8x128xf32>
    %17 = arith.addf %14, %16 : vector<8x128xf32>
    %cst_11 = arith.constant -1.000000e+30 : f32
    %18 = vector.broadcast %cst_11 : f32 to vector<8x128xf32>
    %19 = arith.select %2, %17, %18 : vector<8x128xi1>, vector<8x128xf32>
    %cst_12 = arith.constant dense<0xFF800000> : vector<8xf32>
    %20 = vector.multi_reduction <maximumf>, %19, %cst_12 [1] : vector<8x128xf32> to vector<8xf32>
    %21 = vector.shape_cast %20 : vector<8xf32> to vector<8x1xf32>
    %22 = vector.broadcast %21 : vector<8x1xf32> to vector<8x128xf32>
    %23 = arith.subf %19, %22 : vector<8x128xf32>
    %24 = math.exp %23 : vector<8x128xf32>
    %cst_13 = arith.constant 0.000000e+00 : f32
    %25 = vector.broadcast %cst_13 : f32 to vector<8x128xf32>
    %26 = arith.select %2, %24, %25 : vector<8x128xi1>, vector<8x128xf32>
    %cst_14 = arith.constant dense<0.000000e+00> : vector<8xf32>
    %27 = vector.multi_reduction <add>, %26, %cst_14 [1] : vector<8x128xf32> to vector<8xf32>
    %28 = vector.shape_cast %27 : vector<8xf32> to vector<8x1xf32>
    %29 = vector.broadcast %28 : vector<8x1xf32> to vector<8x128xf32>
    %30 = arith.divf %26, %29 : vector<8x128xf32>
    %c0_15 = arith.constant 0 : index
    %c0_16 = arith.constant 0 : index
    %31 = vector.load %arg6[%c0_15, %c0_16] : memref<8x128xf32, #tpu.memory_space<vmem>>, vector<8x128xf32>
    tpu.vector_store %arg6[%c0_15, %c0_16], %30 {strides = array<i32>} : memref<8x128xf32, #tpu.memory_space<vmem>>, vector<8x128xf32>,
    return
  }
  func.func @transform_0(%arg0: i32) -> (i32, i32) {
    %c0_i32 = arith.constant 0 : i32
    %c0_i32_0 = arith.constant 0 : i32
    return %arg0, %c0_i32 : i32, i32
  }
  func.func @transform_1(%arg0: i32) -> (i32, i32) {
    %c0_i32 = arith.constant 0 : i32
    %c0_i32_0 = arith.constant 0 : i32
    %c0_i32_1 = arith.constant 0 : i32
    return %c0_i32, %c0_i32_0 : i32, i32
  }
  func.func @transform_2(%arg0: i32) -> (i32, i32) {
    %c0_i32 = arith.constant 0 : i32
    %c0_i32_0 = arith.constant 0 : i32
    %c0_i32_1 = arith.constant 0 : i32
    return %c0_i32, %c0_i32_0 : i32, i32
  }
  func.func @transform_3(%arg0: i32) -> (i32, i32) {
    %c0_i32 = arith.constant 0 : i32
    %c0_i32_0 = arith.constant 0 : i32
    %c0_i32_1 = arith.constant 0 : i32
    return %c0_i32, %c0_i32_0 : i32, i32
  }
  func.func @transform_4(%arg0: i32) -> (i32, i32) {
    %c0_i32 = arith.constant 0 : i32
    %c0_i32_0 = arith.constant 0 : i32
    %c0_i32_1 = arith.constant 0 : i32
    return %c0_i32, %c0_i32_0 : i32, i32
  }
  func.func @transform_5(%arg0: i32) -> (i32, i32) {
    %c0_i32 = arith.constant 0 : i32
    %c0_i32_0 = arith.constant 0 : i32
    return %arg0, %c0_i32 : i32, i32
  }
}

</mosaic_0001>

<llo_original>
// kernel: policy_softmax.1
$region0: #{policy_softmax.1}
  #allocation0 [shape = 'u32[]', space=smem, size = 0x4, offset = 0x4, fixed_abs, tag = 'smem constant byte address 0x4 - core index']
  #allocation1 [shape = 'u32[144,128]{1,0:T(1,128)}', space=vmem, size = 0x12000, scoped, tag = 'internal scratch']
  %s0 = inlined_call_operand.hbm [shape: f32[8,32], index: 0, kind: input, shape index: {}]
  %s1 = inlined_call_operand.hbm [shape: bf16[32,128], index: 1, kind: input, shape index: {}]
  %s2 = inlined_call_operand.vmem [shape: f32[1,128], index: 2, kind: input, shape index: {}]
  %s3 = inlined_call_operand.hbm [shape: bf16[128,128], index: 3, kind: input, shape index: {}]
  %s4 = inlined_call_operand.vmem [shape: f32[1,128], index: 4, kind: input, shape index: {}]
  %s5 = inlined_call_operand.hbm [shape: f32[8,128], index: 5, kind: output, shape index: {}]
  %s6 = sld [smem:[#allocation0]]
  $region42: #{policy_softmax.1} parent=0
    _
  %s8 = ssub.s32 1, %s6
  %s9 = scalar_select 0, %s8, %s6
  $region1: #{policy_softmax.1} parent=0
    #allocation2 [shape = 'u8[4096]{0}', space=vmem, size = 0x1000, scoped, tag = 'input window, operand 0, single buffered']
    #allocation3 [shape = 's32[1]{0}', space=sflag, size = 0x4, scoped, tag = 'scoped memory for policy_softmax.1']
    #allocation4 [shape = 's32[1]{0}', space=sflag, size = 0x4, scoped, tag = 'scoped memory for policy_softmax.1']
    #allocation5 [shape = 'u8[8192]{0}', space=vmem, size = 0x2000, scoped, tag = 'input window, operand 1, single buffered']
    #allocation6 [shape = 's32[1]{0}', space=sflag, size = 0x4, scoped, tag = 'scoped memory for policy_softmax.1']
    #allocation7 [shape = 'u8[32768]{0}', space=vmem, size = 0x8000, scoped, tag = 'input window, operand 3, single buffered']
    #allocation8 [shape = 'u8[4096]{0}', space=vmem, size = 0x1000, scoped, tag = 'output window, operand 0, single buffered']
    %10 = vsyncpa [#allocation3], 0
    %11 = vsyncpa [#allocation6], 0
    %12 = vsyncpa [#allocation4], 0
    // Predicated region
    $region2: #{policy_softmax.1} parent=1 // pred_check
      _
    $region3: #{policy_softmax.1} parent=1 // pred_check_branch
      %14 = sbr.rel (0) target = $region5
    $region4: #{policy_softmax.1} parent=1 // pred_region
      %s16 = ssub.s32 128, 128
      %17 = vsyncadd [#allocation3], %s16
      %s19 = sshll.u32 [#allocation2], 4
      %s20 = int_to_ptr.vmem [resolvable:$true] %s19
      %22 = dma.hbm_to_vmem [thread:$0]  %s0, 128, %s20, [#allocation3]
    $region5: #{policy_softmax.1} parent=1 // pred_fallthru
      _
    // Predicated region
    $region6: #{policy_softmax.1} parent=1 // pred_check
      _
    $region7: #{policy_softmax.1} parent=1 // pred_check_branch
      %24 = sbr.rel (0) target = $region9
    $region8: #{policy_softmax.1} parent=1 // pred_region
      %s26 = ssub.s32 256, 256
      %27 = vsyncadd [#allocation6], %s26
      %s28 = sshll.u32 [#allocation5], 4
      %s29 = int_to_ptr.vmem [resolvable:$true] %s28
      %34 = dma.hbm_to_vmem [thread:$0]  %s1, 256, %s29, [#allocation6], 64, 64, 4
    $region9: #{policy_softmax.1} parent=1 // pred_fallthru
      _
    // Predicated region
    $region10: #{policy_softmax.1} parent=1 // pred_check
      _
    $region11: #{policy_softmax.1} parent=1 // pred_check_branch
      %36 = sbr.rel (0) target = $region13
    $region12: #{policy_softmax.1} parent=1 // pred_region
      _
    $region13: #{policy_softmax.1} parent=1 // pred_fallthru
      _
    // Predicated region
    $region14: #{policy_softmax.1} parent=1 // pred_check
      _
    $region15: #{policy_softmax.1} parent=1 // pred_check_branch
      %38 = sbr.rel (0) target = $region17
    $region16: #{policy_softmax.1} parent=1 // pred_region
      %s40 = ssub.s32 1024, 1024
      %41 = vsyncadd [#allocation6], %s40
      %s42 = sshll.u32 [#allocation7], 4
      %s43 = int_to_ptr.vmem [resolvable:$true] %s42
      %48 = dma.hbm_to_vmem [thread:$0]  %s3, 1024, %s43, [#allocation6], 64, 64, 4
    $region17: #{policy_softmax.1} parent=1 // pred_fallthru
      _
    // Predicated region
    $region18: #{policy_softmax.1} parent=1 // pred_check
      _
    $region19: #{policy_softmax.1} parent=1 // pred_check_branch
      %50 = sbr.rel (0) target = $region21
    $region20: #{policy_softmax.1} parent=1 // pred_region
      _
    $region21: #{policy_softmax.1} parent=1 // pred_fallthru
      _
    // Predicated region
    $region22: #{policy_softmax.1} parent=1 // pred_check
      _
    $region23: #{policy_softmax.1} parent=1 // pred_check_branch
      %52 = sbr.rel (0) target = $region25
    $region24: #{policy_softmax.1} parent=1 // pred_region
      %53 = dma.done [#allocation3], 128
    $region25: #{policy_softmax.1} parent=1 // pred_fallthru
      _
    // Predicated region
    $region26: #{policy_softmax.1} parent=1 // pred_check
      _
    $region27: #{policy_softmax.1} parent=1 // pred_check_branch
      %55 = sbr.rel (0) target = $region29
    $region28: #{policy_softmax.1} parent=1 // pred_region
      %56 = dma.done [#allocation6], 256
    $region29: #{policy_softmax.1} parent=1 // pred_fallthru
      _
    // Predicated region
    $region30: #{policy_softmax.1} parent=1 // pred_check
      _
    $region31: #{policy_softmax.1} parent=1 // pred_check_branch
      %58 = sbr.rel (0) target = $region33
    $region32: #{policy_softmax.1} parent=1 // pred_region
      %59 = dma.done [#allocation6], 1024
    $region33: #{policy_softmax.1} parent=1 // pred_fallthru
      _
    %v61 = vlaneseq
    %v62 = vand.u32 %v61, 127
    %vm63 = vcmp.lt.s32.totalorder %v62, 6
    %v64 = vld [vmem:[#allocation2] sm:$0xff]
    %v65 = vpack.c.bf16 %v64, %v64
    %v66 = vld [vmem:[#allocation5] sm:$0xf]
    %v67 = vld [vmem:[#allocation5 + $0x4] sm:$0xf]
    %v68 = vld [vmem:[#allocation5 + $0x8] sm:$0xf]
    %v69 = vld [vmem:[#allocation5 + $0xc] sm:$0xf]
    %v70 = vld [vmem:[%s2] sm:$0x1]
    %v72 = vlaneseq
    %v73 = vshrl.u32 %v72, 7
    %v74 = vsub.s32 0, %v73
    %v75 = vrot.slane %v70, %v74
    %v81 = vunpack.c.l.b16 %v66
    %v82 = vunpack.c.l.b16 %v67
    %v83 = vunpack.c.l.b16 %v68
    %v84 = vunpack.c.l.b16 %v69
    %v85 = vpack.c.b16 %v82, %v81
    %v86 = vpack.c.b16 %v84, %v83
    %vm89 = vcmask 261120
    %v91 = vsel %vm89, %v65, 0
    %93 = vmatprep.subr.bf16.mxu0 0
    %94 = vmatpush1.bf16.msra.mxu0 %v85
    %95 = vmatprep.subr.bf16.mxu0 0
    %96 = vmatpush1.bf16.msra.mxu0 %v86
    %97 = vmatprep.subr.bf16.mxu0 0
    %98 = vmatpush1.bf16.msra.mxu0 0
    %99 = vmatprep.subr.bf16.mxu0 0
    %100 = vmatpush1.bf16.msra.mxu0 0
    %101 = vmatprep.subr.bf16.mxu0 0
    %102 = vmatpush1.bf16.msra.mxu0 0
    %103 = vmatprep.subr.bf16.mxu0 0
    %104 = vmatpush1.bf16.msra.mxu0 0
    %105 = vmatprep.subr.bf16.mxu0 0
    %106 = vmatpush1.bf16.msra.mxu0 0
    %107 = vmatprep.subr.bf16.mxu0 0
    %108 = vmatpush1.bf16.msra.mxu0 0
    %109 = vmatprep.subr.bf16.mxu0 0
    %110 = vmatpush1.bf16.msra.mxu0 0
    %111 = vmatprep.subr.bf16.mxu0 0
    %112 = vmatpush1.bf16.msra.mxu0 0
    %113 = vmatprep.subr.bf16.mxu0 0
    %114 = vmatpush1.bf16.msra.mxu0 0
    %115 = vmatprep.subr.bf16.mxu0 0
    %116 = vmatpush1.bf16.msra.mxu0 0
    %117 = vmatprep.subr.bf16.mxu0 0
    %118 = vmatpush1.bf16.msra.mxu0 0
    %119 = vmatprep.subr.bf16.mxu0 0
    %120 = vmatpush1.bf16.msra.mxu0 0
    %121 = vmatprep.subr.bf16.mxu0 0
    %122 = vmatpush1.bf16.msra.mxu0 0
    %123 = vmatprep.subr.bf16.mxu0 0
    %124 = vmatpush1.bf16.msra.mxu0 0
    %125 = vmatprep.mubr.bf16.mxu0 0
    %126 = vmatmul.mubr.bf16.gmra.mrb[0].mxu0 %v91
    %v127 = vpop.f32.mrb[0].mxu0
    %v128 = vadd.f32 %v75, %v127
    %v129 = vpop.f32.mrb[0].mxu0
    %v130 = vpop.f32.mrb[0].mxu0
    %v131 = vpop.f32.mrb[0].mxu0
    %132 = vdwg.mxu0
    %v133 = vmax.f32 %v128, 0.0
    %v134 = vpack.c.bf16 %v133, %v133
    %v135 = vld [vmem:[#allocation7] sm:$0xf]
    %v136 = vld [vmem:[#allocation7 + $0x4] sm:$0xf]
    %v137 = vld [vmem:[#allocation7 + $0x8] sm:$0xf]
    %v138 = vld [vmem:[#allocation7 + $0xc] sm:$0xf]
    %v139 = vld [vmem:[#allocation7 + $0x10] sm:$0xf]
    %v140 = vld [vmem:[#allocation7 + $0x14] sm:$0xf]
    %v141 = vld [vmem:[#allocation7 + $0x18] sm:$0xf]
    %v142 = vld [vmem:[#allocation7 + $0x1c] sm:$0xf]
    %v143 = vld [vmem:[#allocation7 + $0x20] sm:$0xf]
    %v144 = vld [vmem:[#allocation7 + $0x24] sm:$0xf]
    %v145 = vld [vmem:[#allocation7 + $0x28] sm:$0xf]
    %v146 = vld [vmem:[#allocation7 + $0x2c] sm:$0xf]
    %v147 = vld [vmem:[#allocation7 + $0x30] sm:$0xf]
    %v148 = vld [vmem:[#allocation7 + $0x34] sm:$0xf]
    %v149 = vld [vmem:[#allocation7 + $0x38] sm:$0xf]
    %v150 = vld [vmem:[#allocation7 + $0x3c] sm:$0xf]
    %v151 = vld [vmem:[%s4] sm:$0x1]
    %v153 = vlaneseq
    %v154 = vshrl.u32 %v153, 7
    %v155 = vsub.s32 0, %v154
    %v156 = vrot.slane %v151, %v155
    %v174 = vunpack.c.l.b16 %v135
    %v175 = vunpack.c.l.b16 %v136
    %v176 = vunpack.c.l.b16 %v137
    %v177 = vunpack.c.l.b16 %v138
    %v178 = vunpack.c.l.b16 %v139
    %v179 = vunpack.c.l.b16 %v140
    %v180 = vunpack.c.l.b16 %v141
    %v181 = vunpack.c.l.b16 %v142
    %v182 = vunpack.c.l.b16 %v143
    %v183 = vunpack.c.l.b16 %v144
    %v184 = vunpack.c.l.b16 %v145
    %v185 = vunpack.c.l.b16 %v146
    %v186 = vunpack.c.l.b16 %v147
    %v187 = vunpack.c.l.b16 %v148
    %v188 = vunpack.c.l.b16 %v149
    %v189 = vunpack.c.l.b16 %v150
    %v190 = vpack.c.b16 %v175, %v174
    %v191 = vpack.c.b16 %v177, %v176
    %v192 = vpack.c.b16 %v179, %v178
    %v193 = vpack.c.b16 %v181, %v180
    %v194 = vpack.c.b16 %v183, %v182
    %v195 = vpack.c.b16 %v185, %v184
    %v196 = vpack.c.b16 %v187, %v186
    %v197 = vpack.c.b16 %v189, %v188
    %206 = vmatprep.subr.bf16.mxu0 0
    %207 = vmatpush1.bf16.msra.mxu0 %v190
    %208 = vmatprep.subr.bf16.mxu0 0
    %209 = vmatpush1.bf16.msra.mxu0 %v191
    %210 = vmatprep.subr.bf16.mxu0 0
    %211 = vmatpush1.bf16.msra.mxu0 %v192
    %212 = vmatprep.subr.bf16.mxu0 0
    %213 = vmatpush1.bf16.msra.mxu0 %v193
    %214 = vmatprep.subr.bf16.mxu0 0
    %215 = vmatpush1.bf16.msra.mxu0 %v194
    %216 = vmatprep.subr.bf16.mxu0 0
    %217 = vmatpush1.bf16.msra.mxu0 %v195
    %218 = vmatprep.subr.bf16.mxu0 0
    %219 = vmatpush1.bf16.msra.mxu0 %v196
    %220 = vmatprep.subr.bf16.mxu0 0
    %221 = vmatpush1.bf16.msra.mxu0 %v197
    %222 = vmatprep.subr.bf16.mxu0 0
    %223 = vmatpush1.bf16.msra.mxu0 0
    %224 = vmatprep.subr.bf16.mxu0 0
    %225 = vmatpush1.bf16.msra.mxu0 0
    %226 = vmatprep.subr.bf16.mxu0 0
    %227 = vmatpush1.bf16.msra.mxu0 0
    %228 = vmatprep.subr.bf16.mxu0 0
    %229 = vmatpush1.bf16.msra.mxu0 0
    %230 = vmatprep.subr.bf16.mxu0 0
    %231 = vmatpush1.bf16.msra.mxu0 0
    %232 = vmatprep.subr.bf16.mxu0 0
    %233 = vmatpush1.bf16.msra.mxu0 0
    %234 = vmatprep.subr.bf16.mxu0 0
    %235 = vmatpush1.bf16.msra.mxu0 0
    %236 = vmatprep.subr.bf16.mxu0 0
    %237 = vmatpush1.bf16.msra.mxu0 0
    %238 = vmatprep.mubr.bf16.mxu0 0
    %239 = vmatmul.mubr.bf16.gmra.mrb[0].mxu0 %v134
    %v240 = vpop.f32.mrb[0].mxu0
    %v241 = vadd.f32 %v156, %v240
    %v242 = vpop.f32.mrb[0].mxu0
    %v243 = vpop.f32.mrb[0].mxu0
    %v244 = vpop.f32.mrb[0].mxu0
    %245 = vdwg.mxu0
    %v246 = vsel %vm63, %v241, -1e+30
    %247 = vmax.xlane.f32.xlu0 %v246
    %v248 = vpop.xlane.xlu0 %247
    %v249 = vsub.f32 %v246, %v248
    %v250 = vmul.f32 %v249, 1.442695
    %v251 = vpow.pop %v250
    %v252 = vsel %vm63, %v251, 0.0
    %253 = vadd.xlane.f32.xlu0 %v252
    %v254 = vpop.xlane.xlu0 %253
    %v255 = vrcp.pop %v254
    %v256 = vmul.f32 %v252, %v255
    %257 = vst [vmem:[#allocation8] sm:$0xff] %v256
    // Predicated region
    $region34: #{policy_softmax.1} parent=1 // pred_check
      _
    $region35: #{policy_softmax.1} parent=1 // pred_check_branch
      %259 = sbr.rel (0) target = $region37
    $region36: #{policy_softmax.1} parent=1 // pred_region
      %s261 = ssub.s32 128, 128
      %262 = vsyncadd [#allocation4], %s261
      %s264 = sshll.u32 [#allocation8], 4
      %s265 = int_to_ptr.vmem [resolvable:$true] %s264
      %267 = dma.vmem_to_hbm [thread:$0]  %s265, 128, %s5, [#allocation4]
    $region37: #{policy_softmax.1} parent=1 // pred_fallthru
      _
    // Predicated region
    $region38: #{policy_softmax.1} parent=1 // pred_check
      _
    $region39: #{policy_softmax.1} parent=1 // pred_check_branch
      %269 = sbr.rel (0) target = $region41
    $region40: #{policy_softmax.1} parent=1 // pred_region
      %270 = dma.done [#allocation4], 128
    $region41: #{policy_softmax.1} parent=1 // pred_fallthru
      _
    %271 = vsyncpa [#allocation3], 1
    %272 = vsyncpa [#allocation6], 1
    %273 = vsyncpa [#allocation4], 1

</llo_original>
